<compile_context>
chip_gen: v6e
topology: v6e:2x2x1
jax: 0.10.0
libtpu: 0.0.40
codegen_flags: <defaults>
</compile_context>

<pallas_src>
import functools

import jax
import jax.numpy as jnp
from jax.experimental import pallas as pl
from jax.experimental.pallas import tpu as pltpu


LANE = 128          # vreg lane width
MAX_TILE_R = 2048   # 2048 x 128 x 4B = 1 MiB per f32 buffer (safe on all chips)


def _round_up(a, b):
    return ((a + b - 1) // b) * b


def _quantizer_round_kernel(x_ref, o_ref, *, scale):
    # round(x * scale) / scale  (jnp.round is round-half-to-even, same as torch)
    x = x_ref[...]
    o_ref[...] = (jnp.round(x * scale) / scale).astype(o_ref.dtype)


def _quantizer_sign_kernel(x_ref, o_ref):
    # sign(x) with sign(0) -> +1  (equivalent to: x < 0 ? -1 : +1)
    x = x_ref[...]
    o_ref[...] = jnp.where(x < 0, -1.0, 1.0).astype(o_ref.dtype)


def quantize(x, npoints=3):
    """Pallas implementation of Quantizer.forward (QuantizerFunc.forward)."""
    orig_shape = x.shape
    orig_dtype = x.dtype

    n = x.size
    rows = -(-n // LANE)                               # ceil(n / 128)
    tile_r = min(MAX_TILE_R, _round_up(rows, 8))       # sublane-aligned tile
    rows_padded = _round_up(rows, tile_r)
    n_padded = rows_padded * LANE

    flat = x.reshape(-1)
    if n_padded != n:
        flat = jnp.pad(flat, (0, n_padded - n))
    x2 = flat.reshape(rows_padded, LANE)

    if npoints < 0:
        kernel = _quantizer_sign_kernel
    else:
        kernel = functools.partial(
            _quantizer_round_kernel, scale=float(10 ** npoints)
        )

    grid = (rows_padded // tile_r,)
    out = pl.pallas_call(
        kernel,
        out_shape=jax.ShapeDtypeStruct(x2.shape, orig_dtype),
        grid=grid,
        in_specs=[pl.BlockSpec((tile_r, LANE), lambda i: (i, 0))],
        out_specs=pl.BlockSpec((tile_r, LANE), lambda i: (i, 0)),
        compiler_params=pltpu.CompilerParams(
            dimension_semantics=("parallel",)
        ),
    )(x2)

    out_flat = out.reshape(-1)
    if n_padded != n:
        out_flat = out_flat[:n]
    return out_flat.reshape(orig_shape)


if __name__ == "__main__":
    key = jax.random.PRNGKey(0)
    x = jax.random.normal(key, (2, 4, 16, 16), dtype=jnp.float32)  # NCHW

    # Default module config: Quantizer(npoints=3) -> round to 3 decimals.
    y = quantize(x, npoints=3)
    y = jax.block_until_ready(y)

    ref = jnp.round(x * 1000.0) / 1000.0
    assert y.shape == x.shape and y.dtype == x.dtype
    assert jnp.allclose(y, ref, atol=1e-6)

    # npoints < 0 branch: binarize to sign with zeros -> +1.
    y_sign = quantize(x, npoints=-1)
    y_sign = jax.block_until_ready(y_sign)
    ref_sign = jnp.where(x < 0, -1.0, 1.0).astype(x.dtype)
    assert jnp.allclose(y_sign, ref_sign)
    assert jnp.all(jnp.abs(y_sign) == 1.0)

    print("KERNEL_OK")
</pallas_src>

<mosaic_0001>
module attributes {stable_mosaic.version = 11 : i64} {
  func.func @_quantizer_round_kernel(%arg0: i32, %arg1: memref<16x128xf32, #tpu.memory_space<vmem>>, %arg2: memref<16x128xf32, #tpu.memory_space<vmem>>) attributes {dimension_semantics = [#tpu.dimension_semantics<parallel>], iteration_bounds = array<i64: 1>, scalar_prefetch = 0 : i64, scratch_operands = 0 : i64, tpu.core_type = #tpu.core_type<tc>, window_params = [{transform_indices = @transform_0, window_bounds = array<i64: 16, 128>}, {transform_indices = @transform_1, window_bounds = array<i64: 16, 128>}]} {
    %c0 = arith.constant 0 : index
    %c0_0 = arith.constant 0 : index
    %0 = vector.load %arg1[%c0, %c0_0] : memref<16x128xf32, #tpu.memory_space<vmem>>, vector<16x128xf32>
    %cst = arith.constant 1.000000e+03 : f32
    %1 = vector.broadcast %cst : f32 to vector<16x128xf32>
    %2 = arith.mulf %0, %1 : vector<16x128xf32>
    %3 = math.roundeven %2 : vector<16x128xf32>
    %cst_1 = arith.constant 1.000000e+03 : f32
    %4 = vector.broadcast %cst_1 : f32 to vector<16x128xf32>
    %5 = arith.divf %3, %4 : vector<16x128xf32>
    %c0_2 = arith.constant 0 : index
    %c0_3 = arith.constant 0 : index
    %6 = vector.load %arg2[%c0_2, %c0_3] : memref<16x128xf32, #tpu.memory_space<vmem>>, vector<16x128xf32>
    tpu.vector_store %arg2[%c0_2, %c0_3], %5 {strides = array<i32>} : memref<16x128xf32, #tpu.memory_space<vmem>>, vector<16x128xf32>,
    return
  }
  func.func @transform_0(%arg0: i32) -> (i32, i32) {
    %c0_i32 = arith.constant 0 : i32
    %c0_i32_0 = arith.constant 0 : i32
    return %arg0, %c0_i32 : i32, i32
  }
  func.func @transform_1(%arg0: i32) -> (i32, i32) {
    %c0_i32 = arith.constant 0 : i32
    %c0_i32_0 = arith.constant 0 : i32
    return %arg0, %c0_i32 : i32, i32
  }
}

</mosaic_0001>

<llo_original>
// kernel: tpu_custom_call.1
$region0: #{tpu_custom_call.1}
  #allocation0 [shape = 'u32[]', space=smem, size = 0x4, offset = 0x4, fixed_abs, tag = 'smem constant byte address 0x4 - core index']
  #allocation1 [shape = 'u32[144,128]{1,0:T(1,128)}', space=vmem, size = 0x12000, scoped, tag = 'internal scratch']
  %s0 = inlined_call_operand.hbm [shape: f32[16,128], index: 0, kind: input, shape index: {}]
  %s1 = inlined_call_operand.hbm [shape: f32[16,128], index: 1, kind: output, shape index: {}]
  %s2 = sld [smem:[#allocation0]]
  $region18: #{tpu_custom_call.1} parent=0
    _
  %s4 = ssub.s32 1, %s2
  %s5 = scalar_select 0, %s4, %s2
  $region1: #{tpu_custom_call.1} parent=0
    #allocation2 [shape = 'u8[8192]{0}', space=vmem, size = 0x2000, scoped, tag = 'input window, operand 0, single buffered']
    #allocation3 [shape = 's32[1]{0}', space=sflag, size = 0x4, scoped, tag = 'scoped memory for tpu_custom_call.1']
    #allocation4 [shape = 's32[1]{0}', space=sflag, size = 0x4, scoped, tag = 'scoped memory for tpu_custom_call.1']
    #allocation5 [shape = 'u8[8192]{0}', space=vmem, size = 0x2000, scoped, tag = 'output window, operand 0, single buffered']
    %6 = vsyncpa [#allocation3], 0
    %7 = vsyncpa [#allocation4], 0
    // Predicated region
    $region2: #{tpu_custom_call.1} parent=1 // pred_check
      _
    $region3: #{tpu_custom_call.1} parent=1 // pred_check_branch
      %9 = sbr.rel (0) target = $region5
    $region4: #{tpu_custom_call.1} parent=1 // pred_region
      %s11 = ssub.s32 256, 256
      %12 = vsyncadd [#allocation3], %s11
      %s13 = sshll.u32 [#allocation2], 4
      %s14 = int_to_ptr.vmem [resolvable:$true] %s13
      %19 = dma.hbm_to_vmem [thread:$0]  %s0, 256, %s14, [#allocation3], 128, 128, 8
    $region5: #{tpu_custom_call.1} parent=1 // pred_fallthru
      _
    // Predicated region
    $region6: #{tpu_custom_call.1} parent=1 // pred_check
      _
    $region7: #{tpu_custom_call.1} parent=1 // pred_check_branch
      %21 = sbr.rel (0) target = $region9
    $region8: #{tpu_custom_call.1} parent=1 // pred_region
      %22 = dma.done [#allocation3], 256
    $region9: #{tpu_custom_call.1} parent=1 // pred_fallthru
      _
    %v23 = vld [vmem:[#allocation2] sm:$0xff]
    %v24 = vld [vmem:[#allocation2 + $0x8] sm:$0xff]
    %v25 = vmul.f32 %v23, 1000.0
    %v26 = vmul.f32 %v24, 1000.0
    %v27 = vround.ne.pseudo %v25
    %v28 = vround.ne.pseudo %v26
    %v29 = vrcp.pop 1000.0
    %v30 = vmul.f32 %v27, %v29
    %v31 = vmul.f32 %v28, %v29
    %32 = vst [vmem:[#allocation5] sm:$0xff] %v30
    %33 = vst [vmem:[#allocation5 + $0x8] sm:$0xff] %v31
    // Predicated region
    $region10: #{tpu_custom_call.1} parent=1 // pred_check
      _
    $region11: #{tpu_custom_call.1} parent=1 // pred_check_branch
      %35 = sbr.rel (0) target = $region13
    $region12: #{tpu_custom_call.1} parent=1 // pred_region
      %s37 = ssub.s32 256, 256
      %38 = vsyncadd [#allocation4], %s37
      %s39 = sshll.u32 [#allocation5], 4
      %s40 = int_to_ptr.vmem [resolvable:$true] %s39
      %45 = dma.vmem_to_hbm [thread:$0]  %s40, 256, %s1, [#allocation4], 128, 128, 8
    $region13: #{tpu_custom_call.1} parent=1 // pred_fallthru
      _
    // Predicated region
    $region14: #{tpu_custom_call.1} parent=1 // pred_check
      _
    $region15: #{tpu_custom_call.1} parent=1 // pred_check_branch
      %47 = sbr.rel (0) target = $region17
    $region16: #{tpu_custom_call.1} parent=1 // pred_region
      %48 = dma.done [#allocation4], 256
    $region17: #{tpu_custom_call.1} parent=1 // pred_fallthru
      _
    %49 = vsyncpa [#allocation3], 1
    %50 = vsyncpa [#allocation4], 1

</llo_original>
